<compile_context>
chip_gen: v7x
topology: tpu7x:2x2x1
jax: 0.10.0
libtpu: 0.0.40
codegen_flags: <defaults>
</compile_context>

<pallas_src>
import functools

import jax
import jax.numpy as jnp
from jax.experimental import pallas as pl
from jax.experimental.pallas import tpu as pltpu


def _tv_kernel(ia_ref, if_ref, out_ref, acc1_ref, acc2_ref, *,
               P, W, HW, B, nb, masked):
    # Grid = (num_parts, nb): axis 0 is "parallel" (per-core partition),
    # axis 1 is the "arbitrary" reduction axis over blocks of flattened planes.
    part = pl.program_id(0)
    i = pl.program_id(1)

    @pl.when(i == 0)
    def _init():
        acc1_ref[...] = jnp.zeros_like(acc1_ref)
        acc2_ref[...] = jnp.zeros_like(acc2_ref)

    # One block of B flattened planes per step: (B, H*W).
    x = ia_ref[...].astype(jnp.float32) - if_ref[...].astype(jnp.float32)

    if masked:
        # Ragged tail handled in-kernel (no wrapper-side pad): zero rows whose
        # logical plane index is >= P (garbage read past the end of the array
        # or duplicated rows from a clamped block index).
        base = (part * nb + i) * B
        row = jax.lax.broadcasted_iota(jnp.int32, (B, 1), 0)
        x = jnp.where(base + row < P, x, 0.0)

    # Vertical diffs: x[k+W] - x[k] for k in [0, HW-W); every position valid.
    dh = x[:, W:] - x[:, : HW - W]
    # Horizontal diffs: x[k+1] - x[k]; invalid where k is the last column of an
    # image row (k % W == W - 1).
    dw = x[:, 1:] - x[:, : HW - 1]
    col = jax.lax.broadcasted_iota(jnp.int32, (1, HW - 1), 1)
    dw = jnp.where(col % W == W - 1, 0.0, dw)

    d1 = dh * dh
    d2 = dw * dw
    if B % 8 == 0:
        # Reduce only over sublane-aligned groups of 8 planes (pure VPU adds
        # across vreg slabs); defer the cross-lane/sublane reduce to the end.
        acc1_ref[...] += jnp.sum(d1.reshape(B // 8, 8, HW - W), axis=0)
        acc2_ref[...] += jnp.sum(d2.reshape(B // 8, 8, HW - 1), axis=0)
    else:
        # Tiny, non-sublane-aligned block: plain per-step sublane reduce (XLU).
        acc1_ref[...] += jnp.sum(d1, axis=0, keepdims=True)
        acc2_ref[...] += jnp.sum(d2, axis=0, keepdims=True)

    @pl.when(i == nb - 1)
    def _finalize():
        s1 = jnp.sum(acc1_ref[...])
        s2 = jnp.sum(acc2_ref[...])
        lane = jax.lax.broadcasted_iota(jnp.int32, out_ref.shape, 2)
        # Lane-dense output tile: lane 0 -> tv1 partial sum, lane 1 -> tv2.
        out_ref[...] = jnp.where(lane == 0, s1, 0.0) + jnp.where(lane == 1, s2, 0.0)


def _round_up(x, m):
    return -(-x // m) * m


def _default_num_parts():
    # Two TensorCores only on v7x; on v5e / v6e a second partition is just a
    # serial outer pass with extra overhead.
    try:
        kind = jax.devices()[0].device_kind.lower()
    except Exception:
        return 1
    return 2 if ("v7" in kind or "7x" in kind) else 1


def tv_loss(IA, IF, *, target_tile_bytes=4 * 1024 * 1024, num_parts=None):
    """Pallas implementation of TV_Loss.forward(IA, IF). IA, IF: (N, C, H, W)."""
    assert IA.shape == IF.shape
    N, C, H, W = IA.shape
    # PyTorch .mean() over an empty diff tensor is NaN anyway; guard explicitly.
    assert H >= 2 and W >= 2, "TV loss is undefined for H < 2 or W < 2"

    P = N * C
    HW = H * W
    # Flatten each plane into one lane-dense row: the (B, H*W) block is a single
    # contiguous HBM chunk and VMEM lane rows stay dense even for small W.
    ia = IA.reshape(P, HW)
    if_ = IF.reshape(P, HW)

    if num_parts is None:
        num_parts = _default_num_parts()
    num_parts = max(1, min(num_parts, P // 8))     # never split tiny inputs

    itemsize = max(jnp.dtype(IA.dtype).itemsize, jnp.dtype(IF.dtype).itemsize)
    rg = max(8, 32 // itemsize)                    # sublane row granularity
    w_pad = _round_up(HW, 128)
    row_in = w_pad * itemsize                      # one plane-row (one input) in VMEM
    row_f32 = w_pad * 4

    planes_per_part = -(-P // num_parts)

    # VMEM feasibility: 2 inputs x 2 pipeline buffers x tile, the two (8, ~HW)
    # f32 accumulators, plus ~3 tile-equivalents of f32 headroom for fused
    # elementwise temporaries (r, dh*dh, dw*dw).
    acc_bytes = 2 * 8 * row_f32
    per_plane = 2 * 2 * row_in + 3 * row_f32
    vmem_cap = 44 * 1024 * 1024                    # headroom under v7x's 64 MiB
    b_fit = (vmem_cap - acc_bytes) // per_plane
    if b_fit < min(rg, planes_per_part):
        # TODO(synk): H-halo tiling for planes too large to stream whole.
        raise NotImplementedError(
            f"a single {H}x{W} plane exceeds the VMEM tile budget; "
            "H-tiling with a 1-row halo is not implemented")

    if planes_per_part <= rg:
        B = planes_per_part                        # one small block per partition
    else:
        b_target = max(rg, (target_tile_bytes // row_in) // rg * rg)
        B = max(rg, (min(b_target, b_fit, planes_per_part) // rg) * rg)

    nb = -(-planes_per_part // B)
    valid_blocks = -(-P // B)                      # block positions overlapping data
    needs_mask = (num_parts * nb * B != P)
    needs_clamp = (num_parts * nb > valid_blocks)

    if needs_clamp:
        last_blk = valid_blocks - 1
        in_idx = lambda p, i: (jnp.minimum(p * nb + i, last_blk), 0)
    else:
        in_idx = lambda p, i: (p * nb + i, 0)

    in_spec = pl.BlockSpec((B, HW), in_idx)
    out_spec = pl.BlockSpec((1, 8, 128), lambda p, i: (p, 0, 0))

    acc_rows = 8 if B % 8 == 0 else 1

    step_bytes = acc_bytes + B * per_plane
    vmem_limit = int(max(32 * 1024 * 1024,
                         min(48 * 1024 * 1024, step_bytes + (4 << 20))))

    cost = pl.CostEstimate(
        flops=7 * P * HW,
        transcendentals=0,
        bytes_accessed=2 * num_parts * nb * B * HW * itemsize
        + num_parts * 8 * 128 * 4,
    )

    kernel = functools.partial(
        _tv_kernel, P=P, W=W, HW=HW, B=B, nb=nb, masked=needs_mask)

    out = pl.pallas_call(
        kernel,
        out_shape=jax.ShapeDtypeStruct((num_parts, 8, 128), jnp.float32),
        grid_spec=pltpu.PrefetchScalarGridSpec(
            num_scalar_prefetch=0,
            grid=(num_parts, nb),
            in_specs=[in_spec, in_spec],
            out_specs=out_spec,
            scratch_shapes=[
                pltpu.VMEM((acc_rows, HW - W), jnp.float32),   # tv1 partials
                pltpu.VMEM((acc_rows, HW - 1), jnp.float32),   # tv2 partials
            ],
        ),
        compiler_params=pltpu.CompilerParams(
            dimension_semantics=("parallel", "arbitrary"),
            vmem_limit_bytes=vmem_limit,
        ),
        cost_estimate=cost,
    )(ia, if_)

    # Finish the tiny cross-partition reduction and exact torch-style means here.
    tv1 = jnp.sum(out[:, 0, 0]) / (P * (H - 1) * W)
    tv2 = jnp.sum(out[:, 0, 1]) / (P * H * (W - 1))
    return tv1 + tv2


def _tv_loss_ref(IA, IF):
    r = IA.astype(jnp.float32) - IF.astype(jnp.float32)
    tv1 = jnp.mean((r[:, :, 1:, :] - r[:, :, :-1, :]) ** 2)
    tv2 = jnp.mean((r[:, :, :, 1:] - r[:, :, :, :-1]) ** 2)
    return tv1 + tv2


if __name__ == "__main__":
    key = jax.random.PRNGKey(0)
    ks = jax.random.split(key, 6)

    # Primary case (shapes implied by the module's 4-D (N, C, H, W) inputs).
    N, C, H, W = 2, 4, 16, 16
    IA = jax.random.normal(ks[0], (N, C, H, W), dtype=jnp.float32)
    IF = jax.random.normal(ks[1], (N, C, H, W), dtype=jnp.float32)
    out = jax.block_until_ready(jax.jit(tv_loss)(IA, IF))
    ref = jax.block_until_ready(_tv_loss_ref(IA, IF))
    assert jnp.allclose(out, ref, rtol=1e-5, atol=1e-5), (out, ref)

    # Ragged plane count: exercises the in-kernel tail mask (no wrapper pad)
    # and a boundary block that reads past the end of the array.
    IA2 = jax.random.normal(ks[2], (2, 5, 5, 7), dtype=jnp.float32)
    IF2 = jax.random.normal(ks[3], (2, 5, 5, 7), dtype=jnp.float32)
    out2 = jax.block_until_ready(jax.jit(tv_loss)(IA2, IF2))
    ref2 = jax.block_until_ready(_tv_loss_ref(IA2, IF2))
    assert jnp.allclose(out2, ref2, rtol=1e-5, atol=1e-5), (out2, ref2)

    # Tiny plane count: single, non-sublane-aligned block (B == P == 3).
    IA3 = jax.random.normal(ks[4], (1, 3, 5, 7), dtype=jnp.float32)
    IF3 = jax.random.normal(ks[5], (1, 3, 5, 7), dtype=jnp.float32)
    out3 = jax.block_until_ready(jax.jit(tv_loss)(IA3, IF3))
    ref3 = jax.block_until_ready(_tv_loss_ref(IA3, IF3))
    assert jnp.allclose(out3, ref3, rtol=1e-5, atol=1e-5), (out3, ref3)

    print("KERNEL_OK")
</pallas_src>

<mosaic_0001>
module attributes {stable_mosaic.version = 11 : i64} {
  func.func @_tv_kernel(%arg0: i32, %arg1: i32, %arg2: memref<8x256xf32, #tpu.memory_space<vmem>>, %arg3: memref<8x256xf32, #tpu.memory_space<vmem>>, %arg4: memref<1x8x128xf32, #tpu.memory_space<vmem>>, %arg5: memref<8x240xf32, #tpu.memory_space<vmem>>, %arg6: memref<8x255xf32, #tpu.memory_space<vmem>>) attributes {dimension_semantics = [#tpu.dimension_semantics<parallel>, #tpu.dimension_semantics<arbitrary>], iteration_bounds = array<i64: 1, 1>, scalar_prefetch = 0 : i64, scratch_operands = 2 : i64, tpu.core_type = #tpu.core_type<tc>, window_params = [{transform_indices = @transform_0, window_bounds = array<i64: 8, 256>}, {transform_indices = @transform_1, window_bounds = array<i64: 8, 256>}, {transform_indices = @transform_2, window_bounds = array<i64: 1, 8, 128>}]} {
    %c0_i32 = arith.constant 0 : i32
    %0 = arith.cmpi eq, %arg1, %c0_i32 : i32
    %1 = arith.extui %0 : i1 to i32
    %c0_i32_0 = arith.constant 0 : i32
    %2 = arith.cmpi ne, %1, %c0_i32_0 : i32
    scf.if %2 {
      %cst_20 = arith.constant 0.000000e+00 : f32
      %50 = vector.broadcast %cst_20 : f32 to vector<8x240xf32>
      %c0_21 = arith.constant 0 : index
      %c0_22 = arith.constant 0 : index
      %51 = vector.load %arg5[%c0_21, %c0_22] : memref<8x240xf32, #tpu.memory_space<vmem>>, vector<8x240xf32>
      tpu.vector_store %arg5[%c0_21, %c0_22], %50 {strides = array<i32>} : memref<8x240xf32, #tpu.memory_space<vmem>>, vector<8x240xf32>,
      %cst_23 = arith.constant 0.000000e+00 : f32
      %52 = vector.broadcast %cst_23 : f32 to vector<8x255xf32>
      %c0_24 = arith.constant 0 : index
      %c0_25 = arith.constant 0 : index
      %53 = vector.load %arg6[%c0_24, %c0_25] : memref<8x255xf32, #tpu.memory_space<vmem>>, vector<8x255xf32>
      tpu.vector_store %arg6[%c0_24, %c0_25], %52 {strides = array<i32>} : memref<8x255xf32, #tpu.memory_space<vmem>>, vector<8x255xf32>,
    } else {
    }
    %c0 = arith.constant 0 : index
    %c0_1 = arith.constant 0 : index
    %3 = vector.load %arg2[%c0, %c0_1] : memref<8x256xf32, #tpu.memory_space<vmem>>, vector<8x256xf32>
    %c0_2 = arith.constant 0 : index
    %c0_3 = arith.constant 0 : index
    %4 = vector.load %arg3[%c0_2, %c0_3] : memref<8x256xf32, #tpu.memory_space<vmem>>, vector<8x256xf32>
    %5 = arith.subf %3, %4 : vector<8x256xf32>
    %6 = vector.extract_strided_slice %5 {offsets = [0, 16], sizes = [8, 240], strides = [1, 1]} : vector<8x256xf32> to vector<8x240xf32>
    %7 = vector.extract_strided_slice %5 {offsets = [0, 0], sizes = [8, 240], strides = [1, 1]} : vector<8x256xf32> to vector<8x240xf32>
    %8 = arith.subf %6, %7 : vector<8x240xf32>
    %9 = vector.extract_strided_slice %5 {offsets = [0, 1], sizes = [8, 255], strides = [1, 1]} : vector<8x256xf32> to vector<8x255xf32>
    %10 = vector.extract_strided_slice %5 {offsets = [0, 0], sizes = [8, 255], strides = [1, 1]} : vector<8x256xf32> to vector<8x255xf32>
    %11 = arith.subf %9, %10 : vector<8x255xf32>
    %12 = tpu.iota {dimensions = array<i32: 1>} : vector<1x255xi32>
    %c16_i32 = arith.constant 16 : i32
    %c0_i32_4 = arith.constant 0 : i32
    %13 = arith.cmpi eq, %c16_i32, %c0_i32_4 : i32
    %c1_i32 = arith.constant 1 : i32
    %14 = arith.select %13, %c1_i32, %c16_i32 : i32
    %15 = vector.broadcast %14 : i32 to vector<1x255xi32>
    %16 = arith.remsi %12, %15 : vector<1x255xi32>
    %c0_i32_5 = arith.constant 0 : i32
    %17 = vector.broadcast %c0_i32_5 : i32 to vector<1x255xi32>
    %18 = arith.cmpi ne, %16, %17 : vector<1x255xi32>
    %c0_i32_6 = arith.constant 0 : i32
    %19 = vector.broadcast %c0_i32_6 : i32 to vector<1x255xi32>
    %20 = arith.cmpi slt, %16, %19 : vector<1x255xi32>
    %c0_i32_7 = arith.constant 0 : i32
    %21 = arith.cmpi slt, %14, %c0_i32_7 : i32
    %22 = vector.broadcast %21 : i1 to vector<1x255xi1>
    %23 = vector.broadcast %22 : vector<1x255xi1> to vector<1x255xi1>
    %24 = arith.xori %20, %23 : vector<1x255xi1>
    %25 = arith.andi %24, %18 : vector<1x255xi1>
    %26 = vector.broadcast %14 : i32 to vector<1x255xi32>
    %27 = arith.addi %16, %26 : vector<1x255xi32>
    %28 = arith.select %25, %27, %16 : vector<1x255xi1>, vector<1x255xi32>
    %c15_i32 = arith.constant 15 : i32
    %29 = vector.broadcast %c15_i32 : i32 to vector<1x255xi32>
    %30 = arith.cmpi eq, %28, %29 : vector<1x255xi32>
    %cst = arith.constant 0.000000e+00 : f32
    %31 = vector.shape_cast %30 : vector<1x255xi1> to vector<1x255xi1>
    %32 = vector.broadcast %31 : vector<1x255xi1> to vector<8x255xi1>
    %33 = vector.broadcast %cst : f32 to vector<8x255xf32>
    %34 = arith.select %32, %33, %11 : vector<8x255xi1>, vector<8x255xf32>
    %35 = arith.mulf %8, %8 : vector<8x240xf32>
    %36 = arith.mulf %34, %34 : vector<8x255xf32>
    %c0_8 = arith.constant 0 : index
    %c0_9 = arith.constant 0 : index
    %37 = vector.load %arg5[%c0_8, %c0_9] : memref<8x240xf32, #tpu.memory_space<vmem>>, vector<8x240xf32>
    %38 = vector.shape_cast %35 : vector<8x240xf32> to vector<1x8x240xf32>
    %cst_10 = arith.constant dense<0.000000e+00> : vector<8x240xf32>
    %39 = vector.multi_reduction <add>, %38, %cst_10 [0] : vector<1x8x240xf32> to vector<8x240xf32>
    %40 = arith.addf %37, %39 : vector<8x240xf32>
    %c0_11 = arith.constant 0 : index
    %c0_12 = arith.constant 0 : index
    %41 = vector.load %arg5[%c0_11, %c0_12] : memref<8x240xf32, #tpu.memory_space<vmem>>, vector<8x240xf32>
    tpu.vector_store %arg5[%c0_11, %c0_12], %40 {strides = array<i32>} : memref<8x240xf32, #tpu.memory_space<vmem>>, vector<8x240xf32>,
    %c0_13 = arith.constant 0 : index
    %c0_14 = arith.constant 0 : index
    %42 = vector.load %arg6[%c0_13, %c0_14] : memref<8x255xf32, #tpu.memory_space<vmem>>, vector<8x255xf32>
    %43 = vector.shape_cast %36 : vector<8x255xf32> to vector<1x8x255xf32>
    %cst_15 = arith.constant dense<0.000000e+00> : vector<8x255xf32>
    %44 = vector.multi_reduction <add>, %43, %cst_15 [0] : vector<1x8x255xf32> to vector<8x255xf32>
    %45 = arith.addf %42, %44 : vector<8x255xf32>
    %c0_16 = arith.constant 0 : index
    %c0_17 = arith.constant 0 : index
    %46 = vector.load %arg6[%c0_16, %c0_17] : memref<8x255xf32, #tpu.memory_space<vmem>>, vector<8x255xf32>
    tpu.vector_store %arg6[%c0_16, %c0_17], %45 {strides = array<i32>} : memref<8x255xf32, #tpu.memory_space<vmem>>, vector<8x255xf32>,
    %c0_i32_18 = arith.constant 0 : i32
    %47 = arith.cmpi eq, %arg1, %c0_i32_18 : i32
    %48 = arith.extui %47 : i1 to i32
    %c0_i32_19 = arith.constant 0 : i32
    %49 = arith.cmpi ne, %48, %c0_i32_19 : i32
    scf.if %49 {
      %c0_20 = arith.constant 0 : index
      %c0_21 = arith.constant 0 : index
      %50 = vector.load %arg5[%c0_20, %c0_21] : memref<8x240xf32, #tpu.memory_space<vmem>>, vector<8x240xf32>
      %51 = vector.shape_cast %50 : vector<8x240xf32> to vector<1x8x240xf32>
      %cst_22 = arith.constant dense<0.000000e+00> : vector<1xf32>
      %52 = vector.multi_reduction <add>, %51, %cst_22 [1, 2] : vector<1x8x240xf32> to vector<1xf32>
      %53 = vector.shape_cast %52 : vector<1xf32> to vector<1x1x1xf32>
      %54 = vector.extract %53[0, 0, 0] : f32 from vector<1x1x1xf32>
      %c0_23 = arith.constant 0 : index
      %c0_24 = arith.constant 0 : index
      %55 = vector.load %arg6[%c0_23, %c0_24] : memref<8x255xf32, #tpu.memory_space<vmem>>, vector<8x255xf32>
      %56 = vector.shape_cast %55 : vector<8x255xf32> to vector<1x8x255xf32>
      %cst_25 = arith.constant dense<0.000000e+00> : vector<1xf32>
      %57 = vector.multi_reduction <add>, %56, %cst_25 [1, 2] : vector<1x8x255xf32> to vector<1xf32>
      %58 = vector.shape_cast %57 : vector<1xf32> to vector<1x1x1xf32>
      %59 = vector.extract %58[0, 0, 0] : f32 from vector<1x1x1xf32>
      %60 = tpu.iota {dimensions = array<i32: 2>} : vector<1x8x128xi32>
      %c0_i32_26 = arith.constant 0 : i32
      %61 = vector.broadcast %c0_i32_26 : i32 to vector<1x8x128xi32>
      %62 = arith.cmpi eq, %60, %61 : vector<1x8x128xi32>
      %cst_27 = arith.constant 0.000000e+00 : f32
      %63 = vector.broadcast %54 : f32 to vector<1x8x128xf32>
      %64 = vector.broadcast %cst_27 : f32 to vector<1x8x128xf32>
      %65 = arith.select %62, %63, %64 : vector<1x8x128xi1>, vector<1x8x128xf32>
      %c1_i32_28 = arith.constant 1 : i32
      %66 = vector.broadcast %c1_i32_28 : i32 to vector<1x8x128xi32>
      %67 = arith.cmpi eq, %60, %66 : vector<1x8x128xi32>
      %cst_29 = arith.constant 0.000000e+00 : f32
      %68 = vector.broadcast %59 : f32 to vector<1x8x128xf32>
      %69 = vector.broadcast %cst_29 : f32 to vector<1x8x128xf32>
      %70 = arith.select %67, %68, %69 : vector<1x8x128xi1>, vector<1x8x128xf32>
      %71 = arith.addf %65, %70 : vector<1x8x128xf32>
      %c0_30 = arith.constant 0 : index
      %c0_31 = arith.constant 0 : index
      %c0_32 = arith.constant 0 : index
      %72 = vector.load %arg4[%c0_30, %c0_31, %c0_32] : memref<1x8x128xf32, #tpu.memory_space<vmem>>, vector<1x8x128xf32>
      tpu.vector_store %arg4[%c0_30, %c0_31, %c0_32], %71 {strides = array<i32>} : memref<1x8x128xf32, #tpu.memory_space<vmem>>, vector<1x8x128xf32>,
    } else {
    }
    return
  }
  func.func @transform_0(%arg0: i32, %arg1: i32) -> (i32, i32) {
    %c1_i32 = arith.constant 1 : i32
    %0 = arith.muli %arg0, %c1_i32 : i32
    %1 = arith.addi %0, %arg1 : i32
    %c0_i32 = arith.constant 0 : i32
    %c0_i32_0 = arith.constant 0 : i32
    return %1, %c0_i32 : i32, i32
  }
  func.func @transform_1(%arg0: i32, %arg1: i32) -> (i32, i32) {
    %c1_i32 = arith.constant 1 : i32
    %0 = arith.muli %arg0, %c1_i32 : i32
    %1 = arith.addi %0, %arg1 : i32
    %c0_i32 = arith.constant 0 : i32
    %c0_i32_0 = arith.constant 0 : i32
    return %1, %c0_i32 : i32, i32
  }
  func.func @transform_2(%arg0: i32, %arg1: i32) -> (i32, i32, i32) {
    %c0_i32 = arith.constant 0 : i32
    %c0_i32_0 = arith.constant 0 : i32
    %c0_i32_1 = arith.constant 0 : i32
    return %arg0, %c0_i32, %c0_i32_0 : i32, i32, i32
  }
}

</mosaic_0001>

<llo_original>
// kernel: tv_loss.1
$region0: #{tv_loss.1}
  #allocation0 [shape = 'u32[]', space=smem, size = 0x4, offset = 0x4, fixed_abs, tag = 'smem constant byte address 0x4 - core index']
  #allocation1 [shape = 'u32[144,128]{1,0:T(1,128)}', space=vmem, size = 0x12000, scoped, tag = 'internal scratch']
  #allocation2 [shape = 'f32[8,240]{1,0:T(8,128)}', space=vmem, size = 0x2000, scoped, tag = 'scratch operand']
  #allocation3 [shape = 'f32[8,255]{1,0:T(8,128)}', space=vmem, size = 0x2000, scoped, tag = 'scratch operand']
  %s0 = inlined_call_operand.vmem [shape: f32[8,256], index: 0, kind: input, shape index: {}]
  %s1 = inlined_call_operand.vmem [shape: f32[8,256], index: 1, kind: input, shape index: {}]
  %s2 = inlined_call_operand.vmem [shape: f32[1,8,128], index: 2, kind: output, shape index: {}]
  %s3 = sld [smem:[#allocation0]]
  $region26: #{tv_loss.1} parent=0
    _
  %s5 = ssub.s32 1, %s3
  %s6 = scalar_select 0, %s5, %s3
  // Predicated region
  $region2: #{tv_loss.1} parent=0 // pred_check
    _
  $region3: #{tv_loss.1} parent=0 // pred_check_branch
    %8 = sbr.rel (0) target = $region5
  $region4: #{tv_loss.1} parent=0 // pred_region
    %s9 = sadd.s32 0, 0
    %p10 = scmp.lt.s32.totalorder %s9, 0
    %s11 = scalar_select %p10, %s9, 0
    %s12 = smul.addr %s11, 2
    %s13 = smul.addr %s12, 8
    %s14 = scalar_lea.vmem %s0, %s13
    %s15 = sadd.s32 0, 0
  $region5: #{tv_loss.1} parent=0 // pred_fallthru
    _
  // Predicated region
  $region6: #{tv_loss.1} parent=0 // pred_check
    _
  $region7: #{tv_loss.1} parent=0 // pred_check_branch
    %17 = sbr.rel (0) target = $region9
  $region8: #{tv_loss.1} parent=0 // pred_region
    %s18 = sadd.s32 0, 0
    %p19 = scmp.lt.s32.totalorder %s18, 0
    %s20 = scalar_select %p19, %s18, 0
    %s21 = smul.addr %s20, 2
    %s22 = smul.addr %s21, 8
    %s23 = scalar_lea.vmem %s1, %s22
    %s24 = sadd.s32 0, 0
  $region9: #{tv_loss.1} parent=0 // pred_fallthru
    _
  %s25 = sadd.s32 0, 0
  %p26 = scmp.lt.s32.totalorder %s25, 0
  %s27 = scalar_select %p26, %s25, 0
  %s28 = smul.addr %s27, 2
  %s29 = smul.addr %s28, 8
  %s30 = scalar_lea.vmem %s0, %s29
  %s31 = sadd.s32 0, 0
  %p32 = scmp.lt.s32.totalorder %s31, 0
  %s33 = scalar_select %p32, %s31, 0
  %s34 = smul.addr %s33, 2
  %s35 = smul.addr %s34, 8
  %s36 = scalar_lea.vmem %s1, %s35
  %s37 = sadd.s32 0, 0
  %p38 = scmp.lt.s32.totalorder %s37, 0
  %s39 = scalar_select %p38, %s37, 0
  %s40 = smul.addr %s39, 2
  %s41 = smul.addr %s40, 8
  %s42 = scalar_lea.vmem %s0, %s41
  %s43 = sadd.s32 0, 0
  %s44 = sadd.s32 0, 0
  %p45 = scmp.lt.s32.totalorder %s44, 0
  %s46 = scalar_select %p45, %s44, 0
  %s47 = smul.addr %s46, 2
  %s48 = smul.addr %s47, 8
  %s49 = scalar_lea.vmem %s1, %s48
  %s50 = sadd.s32 0, 0
  %p51 = scmp.eq.s32.totalorder 0, 0
  // Predicated region
  $region10: #{tv_loss.1} parent=0 // pred_check
    %p52 = pneg %p51
  $region11: #{tv_loss.1} parent=0 // pred_check_branch
    %54 = sbr.rel (%p52) target = $region13
  $region12: #{tv_loss.1} parent=0 // pred_region
    %55 = vst [vmem:[#allocation2] sm:$0xff] 0.0
    %vm56 = vcmask 916480
    %57 = vst.msk [vmem:[#allocation2 + $0x8] sm:$0xff] %vm56, 0.0
    %58 = vst [vmem:[#allocation3] sm:$0xff] 0.0
    %vm59 = vcmask 1039360
    %60 = vst.msk [vmem:[#allocation3 + $0x8] sm:$0xff] %vm59, 0.0
  $region13: #{tv_loss.1} parent=0 // pred_fallthru
    _
  %v61 = vld [vmem:[%s42] sm:$0xff]
  %v62 = vld [vmem:[%s42 + $0x8] sm:$0xff]
  %v63 = vld [vmem:[%s49] sm:$0xff]
  %v64 = vld [vmem:[%s49 + $0x8] sm:$0xff]
  %v65 = vsub.f32 %v61, %v63
  %v66 = vsub.f32 %v62, %v64
  %69 = vrot.lane.b32.xlu0 %v65, 16
  %v70 = vpop.permute.xlu0 %69
  %71 = vrot.lane.b32.xlu0 %v66, 16
  %v72 = vpop.permute.xlu0 %71
  %vm73 = vcmask 130048
  %v74 = vsel %vm73, %v70, %v72
  %v77 = vsub.f32 %v65, %v70
  %v78 = vsub.f32 %v66, %v74
  %79 = vrot.lane.b32.xlu0 %v65, 1
  %v80 = vpop.permute.xlu0 %79
  %81 = vrot.lane.b32.xlu0 %v66, 1
  %v82 = vpop.permute.xlu0 %81
  %vm83 = vcmask 7168
  %v84 = vsel %vm83, %v80, %v82
  %v87 = vsub.f32 %v65, %v80
  %v88 = vsub.f32 %v66, %v84
  %v89 = vlaneseq
  %v90 = vand.u32 %v89, 127
  %v91 = vadd.s32 %v90, 128
  %vm92 = vcmp.lt.s32.totalorder %v90, 0
  %v93 = vsub.s32 0, %v90
  %v94 = vsel %vm92, %v93, %v90
  %v95 = vshrl.u32 %v94, 4
  %v96 = vand.u32 %v94, 15
  %v97 = vsub.s32 0, %v96
  %v98 = vsel %vm92, %v97, %v96
  %vm99 = vcmp.lt.s32.totalorder %v91, 0
  %v100 = vsub.s32 0, %v91
  %v101 = vsel %vm99, %v100, %v91
  %v102 = vshrl.u32 %v101, 4
  %v103 = vand.u32 %v101, 15
  %v104 = vsub.s32 0, %v103
  %v105 = vsel %vm99, %v104, %v103
  %vm106 = vcmp.ne.s32.totalorder %v98, 0
  %vm107 = vcmp.ne.s32.totalorder %v105, 0
  %vm108 = vcmp.lt.s32.totalorder %v98, 0
  %vm109 = vcmp.lt.s32.totalorder %v105, 0
  %vm110 = vmand %vm108, %vm106
  %vm111 = vmand %vm109, %vm107
  %v112 = vadd.s32 %v98, 16
  %v113 = vadd.s32 %v105, 16
  %v114 = vsel %vm110, %v112, %v98
  %v115 = vsel %vm111, %v113, %v105
  %vm116 = vcmp.eq.s32.totalorder %v114, 15
  %vm117 = vcmp.eq.s32.totalorder %v115, 15
  %v118 = vsel %vm116, 1, 0
  %v119 = vsel %vm117, 1, 0
  %vm120 = vcmp.eq.s32.totalorder %v118, 1
  %vm121 = vcmp.eq.s32.totalorder %v119, 1
  %124 = vrot.lane.b32.xlu0 %v87, 127
  %v125 = vpop.permute.xlu0 %124
  %126 = vrot.lane.b32.xlu0 %v88, 127
  %v127 = vpop.permute.xlu0 %126
  %vm128 = vcmask 1039360
  %v129 = vsel %vm128, %v125, %v127
  %v132 = vsel %vm120, 0.0, %v129
  %v133 = vsel %vm121, 0.0, %v127
  %v134 = vmul.f32 %v77, %v77
  %v135 = vmul.f32 %v78, %v78
  %v136 = vmul.f32 %v132, %v132
  %v137 = vmul.f32 %v133, %v133
  %v138 = vld [vmem:[#allocation2] sm:$0xff]
  %v139 = vld [vmem:[#allocation2 + $0x8] sm:$0xff]
  %v140 = vadd.f32 %v134, 0.0
  %v141 = vadd.f32 %v135, 0.0
  %144 = vrot.lane.b32.xlu0 %v140, 112
  %v145 = vpop.permute.xlu0 %144
  %146 = vrot.lane.b32.xlu0 %v141, 112
  %v147 = vpop.permute.xlu0 %146
  %vm148 = vcmask 916480
  %v149 = vsel %vm148, %v145, %v147
  %v152 = vadd.f32 %v138, %v149
  %v153 = vadd.f32 %v139, %v147
  %154 = vst [vmem:[#allocation2] sm:$0xff] %v152
  %155 = vst.msk [vmem:[#allocation2 + $0x8] sm:$0xff] %vm148, %v153
  %v156 = vld [vmem:[#allocation3] sm:$0xff]
  %v157 = vld [vmem:[#allocation3 + $0x8] sm:$0xff]
  %v158 = vadd.f32 %v136, 0.0
  %v159 = vadd.f32 %v137, 0.0
  %v160 = vadd.f32 %v156, %v158
  %v161 = vadd.f32 %v157, %v159
  %162 = vst [vmem:[#allocation3] sm:$0xff] %v160
  %163 = vst.msk [vmem:[#allocation3 + $0x8] sm:$0xff] %vm128, %v161
  // Predicated region
  $region14: #{tv_loss.1} parent=0 // pred_check
    %p164 = pneg %p51
  $region15: #{tv_loss.1} parent=0 // pred_check_branch
    %166 = sbr.rel (%p164) target = $region17
  $region16: #{tv_loss.1} parent=0 // pred_region
    %v167 = vld [vmem:[#allocation2] sm:$0xff]
    %v168 = vld [vmem:[#allocation2 + $0x8] sm:$0xff]
    %v169 = vsel %vm148, %v168, 0.0
    %v170 = vadd.f32 %v167, %v169
    %171 = vadd.xlane.f32.xlu0 %v170
    %v172 = vpop.xlane.xlu0 %171
    %v173 = vrot.slane %v172, 4
    %v174 = vadd.f32 %v172, %v173
    %v175 = vrot.slane %v174, 2
    %v176 = vadd.f32 %v174, %v175
    %v177 = vrot.slane %v176, 1
    %v178 = vadd.f32 %v176, %v177
    %s179 = vtos %v178
    %v180 = vld [vmem:[#allocation3] sm:$0xff]
    %v181 = vld [vmem:[#allocation3 + $0x8] sm:$0xff]
    %v182 = vsel %vm128, %v181, 0.0
    %v183 = vadd.f32 %v180, %v182
    %184 = vadd.xlane.f32.xlu0 %v183
    %v185 = vpop.xlane.xlu0 %184
    %v186 = vrot.slane %v185, 4
    %v187 = vadd.f32 %v185, %v186
    %v188 = vrot.slane %v187, 2
    %v189 = vadd.f32 %v187, %v188
    %v190 = vrot.slane %v189, 1
    %v191 = vadd.f32 %v189, %v190
    %s192 = vtos %v191
    %vm193 = vcmp.eq.s32.totalorder %v90, 0
    %v194 = vstv %s179
    %v195 = vsel %vm193, %v194, 0.0
    %vm196 = vcmp.eq.s32.totalorder %v90, 1
    %v197 = vstv %s192
    %v198 = vsel %vm196, %v197, 0.0
    %v199 = vadd.f32 %v195, %v198
    %200 = vst [vmem:[%s2] sm:$0xff] %v199
  $region17: #{tv_loss.1} parent=0 // pred_fallthru
    _
  // Predicated region
  $region18: #{tv_loss.1} parent=0 // pred_check
    _
  $region19: #{tv_loss.1} parent=0 // pred_check_branch
    %202 = sbr.rel (0) target = $region21
  $region20: #{tv_loss.1} parent=0 // pred_region
    _
  $region21: #{tv_loss.1} parent=0 // pred_fallthru
    _
  // Predicated region
  $region22: #{tv_loss.1} parent=0 // pred_check
    _
  $region23: #{tv_loss.1} parent=0 // pred_check_branch
    %204 = sbr.rel (0) target = $region25
  $region24: #{tv_loss.1} parent=0 // pred_region
    _
  $region25: #{tv_loss.1} parent=0 // pred_fallthru
    _

</llo_original>
